<compile_context>
chip_gen: v5e
topology: v5e:2x2
jax: 0.10.0
libtpu: 0.0.40
codegen_flags: <defaults>
</compile_context>

<pallas_src>
import jax
import jax.numpy as jnp
from jax.experimental import pallas as pl
from jax.experimental.pallas import tpu as pltpu

_LANE = 128           # full vreg lane width -> unmasked vector stores
_MAX_TILE_R = 4096    # 4096 x 128 f32 block = 2 MiB; 2x double-buffered
                      # (in + out) = 8 MiB, fits every generation's default
                      # scoped-VMEM limit (16 MiB v5e, 32 MiB v6e/v7x)
_SMALL_FASTPATH = 1 << 18   # below ~256K elements a fused XLA op is cheaper
                            # than a pallas_call launch + reshapes


def _round_up(a, b):
    return ((a + b - 1) // b) * b


def _clamp6_div6_kernel(x_ref, o_ref):
    # v5 = clamp_max(x1, 6) / 6   (v1/v2/v3 are dead in the module's return)
    o_ref[...] = (jnp.minimum(x_ref[...], 6.0) * (1.0 / 6.0)).astype(o_ref.dtype)


def model_forward(x, weight=None):
    """x: any-shape float tensor. `weight` (the Linear(16,16) weight) is
    accepted for interface parity but unused: the returned value of the
    original module does not depend on it."""
    del weight  # dead in the forward pass
    orig_shape = x.shape
    dtype = x.dtype
    n = x.size

    # Tiny inputs (incl. the module's nominal (1,16,28,28)): plain fused XLA op.
    if n < _SMALL_FASTPATH:
        return (jnp.minimum(x, 6.0) * (1.0 / 6.0)).astype(dtype)

    # Lane-dense layout: flatten to (rows, 128).  Sublane alignment depends on
    # dtype packing (8 rows f32, 16 rows bf16/f16, 32 rows int8/fp8).
    itemsize = jnp.dtype(dtype).itemsize
    sublane = 8 * max(1, 4 // itemsize)
    rows = _round_up(max(pl.cdiv(n, _LANE), 1), sublane)
    n_pad = rows * _LANE

    flat = x.reshape(-1)
    if n_pad != n:
        # Rare path: only pad up to the next sublane-aligned row count
        # (NOT to a full tile), so padding traffic stays minimal.
        flat = jnp.pad(flat, (0, n_pad - n))
    x2d = flat.reshape(rows, _LANE)

    # Block sizing: cap at 2 MiB blocks, but keep >= 2 grid steps so both
    # TensorCores stream from HBM on v7x (megacore).  Last block may be ragged;
    # Pallas masks the out-of-bounds writes.
    tile_r = min(_MAX_TILE_R,
                 _round_up(pl.cdiv(rows, 2), sublane),
                 rows)
    tile_r = max(tile_r, sublane)
    grid = pl.cdiv(rows, tile_r)

    out2d = pl.pallas_call(
        _clamp6_div6_kernel,
        out_shape=jax.ShapeDtypeStruct((rows, _LANE), dtype),
        grid_spec=pltpu.PrefetchScalarGridSpec(
            num_scalar_prefetch=0,
            grid=(grid,),
            in_specs=[pl.BlockSpec((tile_r, _LANE), lambda i: (i, 0))],
            out_specs=pl.BlockSpec((tile_r, _LANE), lambda i: (i, 0)),
        ),
        compiler_params=pltpu.CompilerParams(
            dimension_semantics=("parallel",)),
    )(x2d)

    if n_pad != n:
        return out2d.reshape(-1)[:n].reshape(orig_shape)
    return out2d.reshape(orig_shape)


if __name__ == "__main__":
    key = jax.random.PRNGKey(0)
    k1, k2, kw = jax.random.split(key, 3)

    # Deterministic Linear(16,16) weight — unused by the live output path,
    # kept only to exercise the wrapper interface.
    F = 16
    bound = 1.0 / (F ** 0.5)
    weight = jax.random.uniform(kw, (F, F), dtype=jnp.float32,
                                minval=-bound, maxval=bound)

    # 1) Nominal module shape (small -> XLA fast path).
    x_small = jax.random.normal(k1, (1, 16, 28, 28), dtype=jnp.float32)
    out_small = jax.block_until_ready(model_forward(x_small, weight))
    ref_small = jnp.minimum(x_small, 6.0) / 6.0
    assert out_small.shape == x_small.shape
    assert jnp.allclose(out_small, ref_small, atol=1e-6), "small-path mismatch"

    # 2) Larger input (2 MiB) to exercise the Pallas streaming kernel
    #    (2 parallel grid steps of 1 MiB each, no padding, no wrapper copies).
    x_big = jax.random.normal(k2, (8, 16, 64, 64), dtype=jnp.float32)
    out_big = jax.block_until_ready(model_forward(x_big, weight))
    ref_big = jnp.minimum(x_big, 6.0) / 6.0
    assert out_big.shape == x_big.shape
    assert jnp.allclose(out_big, ref_big, atol=1e-6), "pallas-path mismatch"

    print("KERNEL_OK")
</pallas_src>

<mosaic_0001>
module attributes {stable_mosaic.version = 11 : i64} {
  func.func @_clamp6_div6_kernel(%arg0: i32, %arg1: memref<2048x128xf32, #tpu.memory_space<vmem>>, %arg2: memref<2048x128xf32, #tpu.memory_space<vmem>>) attributes {dimension_semantics = [#tpu.dimension_semantics<parallel>], iteration_bounds = array<i64: 2>, scalar_prefetch = 0 : i64, scratch_operands = 0 : i64, tpu.core_type = #tpu.core_type<tc>, window_params = [{transform_indices = @transform_0, window_bounds = array<i64: 2048, 128>}, {transform_indices = @transform_1, window_bounds = array<i64: 2048, 128>}]} {
    %c0 = arith.constant 0 : index
    %c0_0 = arith.constant 0 : index
    %0 = vector.load %arg1[%c0, %c0_0] : memref<2048x128xf32, #tpu.memory_space<vmem>>, vector<2048x128xf32>
    %cst = arith.constant 6.000000e+00 : f32
    %1 = vector.broadcast %cst : f32 to vector<2048x128xf32>
    %2 = arith.minimumf %0, %1 : vector<2048x128xf32>
    %cst_1 = arith.constant 0.166666672 : f32
    %3 = vector.broadcast %cst_1 : f32 to vector<2048x128xf32>
    %4 = arith.mulf %2, %3 : vector<2048x128xf32>
    %c0_2 = arith.constant 0 : index
    %c0_3 = arith.constant 0 : index
    %5 = vector.load %arg2[%c0_2, %c0_3] : memref<2048x128xf32, #tpu.memory_space<vmem>>, vector<2048x128xf32>
    tpu.vector_store %arg2[%c0_2, %c0_3], %4 {strides = array<i32>} : memref<2048x128xf32, #tpu.memory_space<vmem>>, vector<2048x128xf32>,
    return
  }
  func.func @transform_0(%arg0: i32) -> (i32, i32) {
    %c0_i32 = arith.constant 0 : i32
    %c0_i32_0 = arith.constant 0 : i32
    return %arg0, %c0_i32 : i32, i32
  }
  func.func @transform_1(%arg0: i32) -> (i32, i32) {
    %c0_i32 = arith.constant 0 : i32
    %c0_i32_0 = arith.constant 0 : i32
    return %arg0, %c0_i32 : i32, i32
  }
}

</mosaic_0001>

<llo_original>
// kernel: tpu_custom_call.1
$region0: #{tpu_custom_call.1}
  #allocation0 [shape = 'u32[]', space=smem, size = 0x4, offset = 0x4, fixed_abs, tag = 'smem constant byte address 0x4 - core index']
  #allocation1 [shape = 'u32[72,128]{1,0:T(1,128)}', space=vmem, size = 0x9000, scoped, tag = 'internal scratch']
  %s0 = inlined_call_operand.hbm [shape: f32[4096,128], index: 0, kind: input, shape index: {}]
  %s1 = inlined_call_operand.hbm [shape: f32[4096,128], index: 1, kind: output, shape index: {}]
  %s2 = sld [smem:[#allocation0]]
  $region41: #{tpu_custom_call.1} parent=0
    _
  %s4 = ssub.s32 1, %s2
  %s5 = scalar_select 0, %s4, %s2
  $region1: #{tpu_custom_call.1} parent=0
    #allocation2 [shape = 'u8[2097152]{0}', space=vmem, size = 0x200000, scoped, tag = 'input window, operand 0']
    #allocation3 [shape = 's32[2]{0}', space=sflag, size = 0x8, scoped, tag = 'scoped memory for tpu_custom_call.1']
    #allocation4 [shape = 's32[2]{0}', space=sflag, size = 0x8, scoped, tag = 'scoped memory for tpu_custom_call.1']
    #allocation5 [shape = 'u8[2097152]{0}', space=vmem, size = 0x200000, scoped, tag = 'output window, operand 0']
    %6 = vsyncpa [#allocation3], 0
    %s7 = scalar_lea.sflag [#allocation3], 1
    %8 = vsyncpa %s7, 0
    %9 = vsyncpa [#allocation4], 0
    %s10 = scalar_lea.sflag [#allocation4], 1
    %11 = vsyncpa %s10, 0
    loop: start=0, step=1, limit=4
    $region2: #{tpu_custom_call.1} parent=1 // loop_pre_header
      _
    $region3: #{tpu_custom_call.1} parent=1 // loop_header
      %s13 = sphi 0, %s17
      %p14 = scmp.ge.s32.totalorder %s13, 4
      %s23 = sphi 0, %s25
      %s26 = sphi 0, %s23
      %s27 = sphi 0, %s26
      %s43 = sphi 0, %s27
      %s49 = sphi 0, %s51
      %s52 = sphi 0, %s49
      %s53 = sphi 0, %s52
      %s69 = sphi 0, %s53
    $region4: #{tpu_custom_call.1} parent=1 // loop_header_branch
      %16 = sbr.rel (%p14) target = $region8
    $region5: #{tpu_custom_call.1} parent=1 // loop_body
      %s18 = ssub.s32 %s13, 1
      %s19 = ssub.s32 %s13, 2
      %s20 = sadd.s32 %s13, 1
      %s21 = ssub.s32 %s13, %s20
      %p22 = scmp.eq.s32.totalorder %s21, 0
      %s24 = sadd.s32 %s23, 1
      %s25 = scalar_select %p22, %s23, %s24
      %p28 = pneg %p22
      %p29 = scmp.eq.s32.totalorder %s13, 1
      %p30 = por %p28, %p29
      %p31 = scmp.ne.s32.totalorder %s23, %s26
      %p32 = scmp.eq.s32.totalorder %s13, 0
      %p33 = por %p31, %p32
      %p34 = scmp.ne.s32.totalorder %s23, %s26
      %p35 = scmp.eq.s32.totalorder %s18, 1
      %p36 = por %p34, %p35
      %p37 = scmp.ne.s32.totalorder %s26, %s27
      %p38 = scmp.eq.s32.totalorder %s18, 0
      %p39 = por %p37, %p38
      %p40 = scmp.ne.s32.totalorder %s26, %s27
      %p41 = scmp.eq.s32.totalorder %s19, 1
      %p42 = por %p40, %p41
      %p44 = scmp.ne.s32.totalorder %s27, %s43
      %p45 = scmp.eq.s32.totalorder %s19, 0
      %p46 = por %p44, %p45
      %s47 = ssub.s32 %s13, %s20
      %p48 = scmp.eq.s32.totalorder %s47, 0
      %s50 = sadd.s32 %s49, 1
      %s51 = scalar_select %p48, %s49, %s50
      %p54 = pneg %p48
      %p55 = scmp.eq.s32.totalorder %s13, 1
      %p56 = por %p54, %p55
      %p57 = scmp.ne.s32.totalorder %s49, %s52
      %p58 = scmp.eq.s32.totalorder %s13, 0
      %p59 = por %p57, %p58
      %p60 = scmp.ne.s32.totalorder %s49, %s52
      %p61 = scmp.eq.s32.totalorder %s18, 1
      %p62 = por %p60, %p61
      %p63 = scmp.ne.s32.totalorder %s52, %s53
      %p64 = scmp.eq.s32.totalorder %s18, 0
      %p65 = por %p63, %p64
      %p66 = scmp.ne.s32.totalorder %s52, %s53
      %p67 = scmp.eq.s32.totalorder %s19, 1
      %p68 = por %p66, %p67
      %p70 = scmp.ne.s32.totalorder %s53, %s69
      %p71 = scmp.eq.s32.totalorder %s19, 0
      %p72 = por %p70, %p71
      %p73 = scmp.le.s32.totalorder 1, %s13
      %p74 = scmp.lt.s32.totalorder %s13, 3
      %p75 = pnand %p73, %p74
      %p76 = pneg %p75
      // Predicated region
      $region9: #{tpu_custom_call.1} parent=5 // pred_check
        _
      $region10: #{tpu_custom_call.1} parent=5 // pred_check_branch
        %78 = sbr.rel (%p75) target = $region12
      $region11: #{tpu_custom_call.1} parent=5 // pred_region
        %s79 = ssub.s32 %s13, 1
      $region12: #{tpu_custom_call.1} parent=5 // pred_fallthru
        _
      %p80 = scmp.lt.s32.totalorder %s13, 2
      // Predicated region
      $region13: #{tpu_custom_call.1} parent=5 // pred_check
        %p81 = pneg %p80
      $region14: #{tpu_custom_call.1} parent=5 // pred_check_branch
        %83 = sbr.rel (%p81) target = $region16
      $region15: #{tpu_custom_call.1} parent=5 // pred_region
        // Predicated region
        $region17: #{tpu_custom_call.1} parent=15 // pred_check
          %p84 = pneg %p33
        $region18: #{tpu_custom_call.1} parent=15 // pred_check_branch
          %86 = sbr.rel (%p84) target = $region20
        $region19: #{tpu_custom_call.1} parent=15 // pred_region
          %s87 = sand.u32 %s23, 1
          %s88 = scalar_lea.sflag [#allocation3], %s87
          %s89 = sand.u32 %s23, 1
          %s90 = smul.addr %s89, 2048
          %s91 = scalar_lea.vmem [#allocation2], %s90
          %s92 = smul.u32 256, %s13
          %94 = vsyncadd %s88, 0
          %s95 = smul.addr %s92, 8
          %s96 = scalar_lea.hbm %s0, %s95
          %s97 = sshll.u32 %s96, 4
          %s98 = int_to_ptr.hbm [resolvable:$true] %s97
          %s99 = sshll.u32 %s91, 4
          %s100 = int_to_ptr.vmem [resolvable:$true] %s99
          %105 = dma.hbm_to_vmem [thread:$0]  %s98, 32768, %s100, %s88, 128, 128, 8
        $region20: #{tpu_custom_call.1} parent=15 // pred_fallthru
          _
      $region16: #{tpu_custom_call.1} parent=5 // pred_fallthru
        _
      %p106 = scmp.le.s32.totalorder 1, %s13
      %p107 = scmp.lt.s32.totalorder %s13, 3
      %p108 = pnand %p106, %p107
      %p109 = pneg %p108
      // Predicated region
      $region21: #{tpu_custom_call.1} parent=5 // pred_check
        _
      $region22: #{tpu_custom_call.1} parent=5 // pred_check_branch
        %111 = sbr.rel (%p108) target = $region24
      $region23: #{tpu_custom_call.1} parent=5 // pred_region
        %s112 = ssub.s32 %s13, 1
        %s113 = sand.u32 %s26, 1
        %s114 = scalar_lea.sflag [#allocation3], %s113
        %s115 = sand.u32 %s26, 1
        %s116 = smul.addr %s115, 2048
        %s117 = scalar_lea.vmem [#allocation2], %s116
        // Predicated region
        $region25: #{tpu_custom_call.1} parent=23 // pred_check
          %p118 = pneg %p39
        $region26: #{tpu_custom_call.1} parent=23 // pred_check_branch
          %120 = sbr.rel (%p118) target = $region28
        $region27: #{tpu_custom_call.1} parent=23 // pred_region
          %122 = dma.done %s114, 32768
        $region28: #{tpu_custom_call.1} parent=23 // pred_fallthru
          _
        %s123 = sand.u32 %s26, 1
        %s124 = scalar_lea.sflag [#allocation3], %s123
        %s125 = sand.u32 %s26, 1
        %s126 = smul.addr %s125, 2048
        %s127 = scalar_lea.vmem [#allocation2], %s126
        %p128 = pneg %p39
        %p129 = pneg %p36
        %p130 = pneg %p65
        %p131 = pneg %p62
        %s132 = sand.u32 %s52, 1
        %s133 = scalar_lea.sflag [#allocation4], %s132
        %s134 = sand.u32 %s52, 1
        %s135 = smul.addr %s134, 2048
        %s136 = scalar_lea.vmem [#allocation5], %s135
        %s137 = smul.u32 256, %s18
        %s138 = smul.u32 256, %s18
        %v139 = vld [vmem:[%s117] sm:$0xff]
        %v140 = vld [vmem:[%s117 + $0x8] sm:$0xff]
        %v141 = vld [vmem:[%s117 + $0x10] sm:$0xff]
        %v142 = vld [vmem:[%s117 + $0x18] sm:$0xff]
        %v143 = vld [vmem:[%s117 + $0x20] sm:$0xff]
        %v144 = vld [vmem:[%s117 + $0x28] sm:$0xff]
        %v145 = vld [vmem:[%s117 + $0x30] sm:$0xff]
        %v146 = vld [vmem:[%s117 + $0x38] sm:$0xff]
        %v147 = vld [vmem:[%s117 + $0x40] sm:$0xff]
        %v148 = vld [vmem:[%s117 + $0x48] sm:$0xff]
        %v149 = vld [vmem:[%s117 + $0x50] sm:$0xff]
        %v150 = vld [vmem:[%s117 + $0x58] sm:$0xff]
        %v151 = vld [vmem:[%s117 + $0x60] sm:$0xff]
        %v152 = vld [vmem:[%s117 + $0x68] sm:$0xff]
        %v153 = vld [vmem:[%s117 + $0x70] sm:$0xff]
        %v154 = vld [vmem:[%s117 + $0x78] sm:$0xff]
        %v155 = vld [vmem:[%s117 + $0x80] sm:$0xff]
        %v156 = vld [vmem:[%s117 + $0x88] sm:$0xff]
        %v157 = vld [vmem:[%s117 + $0x90] sm:$0xff]
        %v158 = vld [vmem:[%s117 + $0x98] sm:$0xff]
        %v159 = vld [vmem:[%s117 + $0xa0] sm:$0xff]
        %v160 = vld [vmem:[%s117 + $0xa8] sm:$0xff]
        %v161 = vld [vmem:[%s117 + $0xb0] sm:$0xff]
        %v162 = vld [vmem:[%s117 + $0xb8] sm:$0xff]
        %v163 = vld [vmem:[%s117 + $0xc0] sm:$0xff]
        %v164 = vld [vmem:[%s117 + $0xc8] sm:$0xff]
        %v165 = vld [vmem:[%s117 + $0xd0] sm:$0xff]
        %v166 = vld [vmem:[%s117 + $0xd8] sm:$0xff]
        %v167 = vld [vmem:[%s117 + $0xe0] sm:$0xff]
        %v168 = vld [vmem:[%s117 + $0xe8] sm:$0xff]
        %v169 = vld [vmem:[%s117 + $0xf0] sm:$0xff]
        %v170 = vld [vmem:[%s117 + $0xf8] sm:$0xff]
        %v171 = vld [vmem:[%s117 + $0x100] sm:$0xff]
        %v172 = vld [vmem:[%s117 + $0x108] sm:$0xff]
        %v173 = vld [vmem:[%s117 + $0x110] sm:$0xff]
        %v174 = vld [vmem:[%s117 + $0x118] sm:$0xff]
        %v175 = vld [vmem:[%s117 + $0x120] sm:$0xff]
        %v176 = vld [vmem:[%s117 + $0x128] sm:$0xff]
        %v177 = vld [vmem:[%s117 + $0x130] sm:$0xff]
        %v178 = vld [vmem:[%s117 + $0x138] sm:$0xff]
        %v179 = vld [vmem:[%s117 + $0x140] sm:$0xff]
        %v180 = vld [vmem:[%s117 + $0x148] sm:$0xff]
        %v181 = vld [vmem:[%s117 + $0x150] sm:$0xff]
        %v182 = vld [vmem:[%s117 + $0x158] sm:$0xff]
        %v183 = vld [vmem:[%s117 + $0x160] sm:$0xff]
        %v184 = vld [vmem:[%s117 + $0x168] sm:$0xff]
        %v185 = vld [vmem:[%s117 + $0x170] sm:$0xff]
        %v186 = vld [vmem:[%s117 + $0x178] sm:$0xff]
        %v187 = vld [vmem:[%s117 + $0x180] sm:$0xff]
        %v188 = vld [vmem:[%s117 + $0x188] sm:$0xff]
        %v189 = vld [vmem:[%s117 + $0x190] sm:$0xff]
        %v190 = vld [vmem:[%s117 + $0x198] sm:$0xff]
        %v191 = vld [vmem:[%s117 + $0x1a0] sm:$0xff]
        %v192 = vld [vmem:[%s117 + $0x1a8] sm:$0xff]
        %v193 = vld [vmem:[%s117 + $0x1b0] sm:$0xff]
        %v194 = vld [vmem:[%s117 + $0x1b8] sm:$0xff]
        %v195 = vld [vmem:[%s117 + $0x1c0] sm:$0xff]
        %v196 = vld [vmem:[%s117 + $0x1c8] sm:$0xff]
        %v197 = vld [vmem:[%s117 + $0x1d0] sm:$0xff]
        %v198 = vld [vmem:[%s117 + $0x1d8] sm:$0xff]
        %v199 = vld [vmem:[%s117 + $0x1e0] sm:$0xff]
        %v200 = vld [vmem:[%s117 + $0x1e8] sm:$0xff]
        %v201 = vld [vmem:[%s117 + $0x1f0] sm:$0xff]
        %v202 = vld [vmem:[%s117 + $0x1f8] sm:$0xff]
        %v203 = vld [vmem:[%s117 + $0x200] sm:$0xff]
        %v204 = vld [vmem:[%s117 + $0x208] sm:$0xff]
        %v205 = vld [vmem:[%s117 + $0x210] sm:$0xff]
        %v206 = vld [vmem:[%s117 + $0x218] sm:$0xff]
        %v207 = vld [vmem:[%s117 + $0x220] sm:$0xff]
        %v208 = vld [vmem:[%s117 + $0x228] sm:$0xff]
        %v209 = vld [vmem:[%s117 + $0x230] sm:$0xff]
        %v210 = vld [vmem:[%s117 + $0x238] sm:$0xff]
        %v211 = vld [vmem:[%s117 + $0x240] sm:$0xff]
        %v212 = vld [vmem:[%s117 + $0x248] sm:$0xff]
        %v213 = vld [vmem:[%s117 + $0x250] sm:$0xff]
        %v214 = vld [vmem:[%s117 + $0x258] sm:$0xff]
        %v215 = vld [vmem:[%s117 + $0x260] sm:$0xff]
        %v216 = vld [vmem:[%s117 + $0x268] sm:$0xff]
        %v217 = vld [vmem:[%s117 + $0x270] sm:$0xff]
        %v218 = vld [vmem:[%s117 + $0x278] sm:$0xff]
        %v219 = vld [vmem:[%s117 + $0x280] sm:$0xff]
        %v220 = vld [vmem:[%s117 + $0x288] sm:$0xff]
        %v221 = vld [vmem:[%s117 + $0x290] sm:$0xff]
        %v222 = vld [vmem:[%s117 + $0x298] sm:$0xff]
        %v223 = vld [vmem:[%s117 + $0x2a0] sm:$0xff]
        %v224 = vld [vmem:[%s117 + $0x2a8] sm:$0xff]
        %v225 = vld [vmem:[%s117 + $0x2b0] sm:$0xff]
        %v226 = vld [vmem:[%s117 + $0x2b8] sm:$0xff]
        %v227 = vld [vmem:[%s117 + $0x2c0] sm:$0xff]
        %v228 = vld [vmem:[%s117 + $0x2c8] sm:$0xff]
        %v229 = vld [vmem:[%s117 + $0x2d0] sm:$0xff]
        %v230 = vld [vmem:[%s117 + $0x2d8] sm:$0xff]
        %v231 = vld [vmem:[%s117 + $0x2e0] sm:$0xff]
        %v232 = vld [vmem:[%s117 + $0x2e8] sm:$0xff]
        %v233 = vld [vmem:[%s117 + $0x2f0] sm:$0xff]
        %v234 = vld [vmem:[%s117 + $0x2f8] sm:$0xff]
        %v235 = vld [vmem:[%s117 + $0x300] sm:$0xff]
        %v236 = vld [vmem:[%s117 + $0x308] sm:$0xff]
        %v237 = vld [vmem:[%s117 + $0x310] sm:$0xff]
        %v238 = vld [vmem:[%s117 + $0x318] sm:$0xff]
        %v239 = vld [vmem:[%s117 + $0x320] sm:$0xff]
        %v240 = vld [vmem:[%s117 + $0x328] sm:$0xff]
        %v241 = vld [vmem:[%s117 + $0x330] sm:$0xff]
        %v242 = vld [vmem:[%s117 + $0x338] sm:$0xff]
        %v243 = vld [vmem:[%s117 + $0x340] sm:$0xff]
        %v244 = vld [vmem:[%s117 + $0x348] sm:$0xff]
        %v245 = vld [vmem:[%s117 + $0x350] sm:$0xff]
        %v246 = vld [vmem:[%s117 + $0x358] sm:$0xff]
        %v247 = vld [vmem:[%s117 + $0x360] sm:$0xff]
        %v248 = vld [vmem:[%s117 + $0x368] sm:$0xff]
        %v249 = vld [vmem:[%s117 + $0x370] sm:$0xff]
        %v250 = vld [vmem:[%s117 + $0x378] sm:$0xff]
        %v251 = vld [vmem:[%s117 + $0x380] sm:$0xff]
        %v252 = vld [vmem:[%s117 + $0x388] sm:$0xff]
        %v253 = vld [vmem:[%s117 + $0x390] sm:$0xff]
        %v254 = vld [vmem:[%s117 + $0x398] sm:$0xff]
        %v255 = vld [vmem:[%s117 + $0x3a0] sm:$0xff]
        %v256 = vld [vmem:[%s117 + $0x3a8] sm:$0xff]
        %v257 = vld [vmem:[%s117 + $0x3b0] sm:$0xff]
        %v258 = vld [vmem:[%s117 + $0x3b8] sm:$0xff]
        %v259 = vld [vmem:[%s117 + $0x3c0] sm:$0xff]
        %v260 = vld [vmem:[%s117 + $0x3c8] sm:$0xff]
        %v261 = vld [vmem:[%s117 + $0x3d0] sm:$0xff]
        %v262 = vld [vmem:[%s117 + $0x3d8] sm:$0xff]
        %v263 = vld [vmem:[%s117 + $0x3e0] sm:$0xff]
        %v264 = vld [vmem:[%s117 + $0x3e8] sm:$0xff]
        %v265 = vld [vmem:[%s117 + $0x3f0] sm:$0xff]
        %v266 = vld [vmem:[%s117 + $0x3f8] sm:$0xff]
        %v267 = vld [vmem:[%s117 + $0x400] sm:$0xff]
        %v268 = vld [vmem:[%s117 + $0x408] sm:$0xff]
        %v269 = vld [vmem:[%s117 + $0x410] sm:$0xff]
        %v270 = vld [vmem:[%s117 + $0x418] sm:$0xff]
        %v271 = vld [vmem:[%s117 + $0x420] sm:$0xff]
        %v272 = vld [vmem:[%s117 + $0x428] sm:$0xff]
        %v273 = vld [vmem:[%s117 + $0x430] sm:$0xff]
        %v274 = vld [vmem:[%s117 + $0x438] sm:$0xff]
        %v275 = vld [vmem:[%s117 + $0x440] sm:$0xff]
        %v276 = vld [vmem:[%s117 + $0x448] sm:$0xff]
        %v277 = vld [vmem:[%s117 + $0x450] sm:$0xff]
        %v278 = vld [vmem:[%s117 + $0x458] sm:$0xff]
        %v279 = vld [vmem:[%s117 + $0x460] sm:$0xff]
        %v280 = vld [vmem:[%s117 + $0x468] sm:$0xff]
        %v281 = vld [vmem:[%s117 + $0x470] sm:$0xff]
        %v282 = vld [vmem:[%s117 + $0x478] sm:$0xff]
        %v283 = vld [vmem:[%s117 + $0x480] sm:$0xff]
        %v284 = vld [vmem:[%s117 + $0x488] sm:$0xff]
        %v285 = vld [vmem:[%s117 + $0x490] sm:$0xff]
        %v286 = vld [vmem:[%s117 + $0x498] sm:$0xff]
        %v287 = vld [vmem:[%s117 + $0x4a0] sm:$0xff]
        %v288 = vld [vmem:[%s117 + $0x4a8] sm:$0xff]
        %v289 = vld [vmem:[%s117 + $0x4b0] sm:$0xff]
        %v290 = vld [vmem:[%s117 + $0x4b8] sm:$0xff]
        %v291 = vld [vmem:[%s117 + $0x4c0] sm:$0xff]
        %v292 = vld [vmem:[%s117 + $0x4c8] sm:$0xff]
        %v293 = vld [vmem:[%s117 + $0x4d0] sm:$0xff]
        %v294 = vld [vmem:[%s117 + $0x4d8] sm:$0xff]
        %v295 = vld [vmem:[%s117 + $0x4e0] sm:$0xff]
        %v296 = vld [vmem:[%s117 + $0x4e8] sm:$0xff]
        %v297 = vld [vmem:[%s117 + $0x4f0] sm:$0xff]
        %v298 = vld [vmem:[%s117 + $0x4f8] sm:$0xff]
        %v299 = vld [vmem:[%s117 + $0x500] sm:$0xff]
        %v300 = vld [vmem:[%s117 + $0x508] sm:$0xff]
        %v301 = vld [vmem:[%s117 + $0x510] sm:$0xff]
        %v302 = vld [vmem:[%s117 + $0x518] sm:$0xff]
        %v303 = vld [vmem:[%s117 + $0x520] sm:$0xff]
        %v304 = vld [vmem:[%s117 + $0x528] sm:$0xff]
        %v305 = vld [vmem:[%s117 + $0x530] sm:$0xff]
        %v306 = vld [vmem:[%s117 + $0x538] sm:$0xff]
        %v307 = vld [vmem:[%s117 + $0x540] sm:$0xff]
        %v308 = vld [vmem:[%s117 + $0x548] sm:$0xff]
        %v309 = vld [vmem:[%s117 + $0x550] sm:$0xff]
        %v310 = vld [vmem:[%s117 + $0x558] sm:$0xff]
        %v311 = vld [vmem:[%s117 + $0x560] sm:$0xff]
        %v312 = vld [vmem:[%s117 + $0x568] sm:$0xff]
        %v313 = vld [vmem:[%s117 + $0x570] sm:$0xff]
        %v314 = vld [vmem:[%s117 + $0x578] sm:$0xff]
        %v315 = vld [vmem:[%s117 + $0x580] sm:$0xff]
        %v316 = vld [vmem:[%s117 + $0x588] sm:$0xff]
        %v317 = vld [vmem:[%s117 + $0x590] sm:$0xff]
        %v318 = vld [vmem:[%s117 + $0x598] sm:$0xff]
        %v319 = vld [vmem:[%s117 + $0x5a0] sm:$0xff]
        %v320 = vld [vmem:[%s117 + $0x5a8] sm:$0xff]
        %v321 = vld [vmem:[%s117 + $0x5b0] sm:$0xff]
        %v322 = vld [vmem:[%s117 + $0x5b8] sm:$0xff]
        %v323 = vld [vmem:[%s117 + $0x5c0] sm:$0xff]
        %v324 = vld [vmem:[%s117 + $0x5c8] sm:$0xff]
        %v325 = vld [vmem:[%s117 + $0x5d0] sm:$0xff]
        %v326 = vld [vmem:[%s117 + $0x5d8] sm:$0xff]
        %v327 = vld [vmem:[%s117 + $0x5e0] sm:$0xff]
        %v328 = vld [vmem:[%s117 + $0x5e8] sm:$0xff]
        %v329 = vld [vmem:[%s117 + $0x5f0] sm:$0xff]
        %v330 = vld [vmem:[%s117 + $0x5f8] sm:$0xff]
        %v331 = vld [vmem:[%s117 + $0x600] sm:$0xff]
        %v332 = vld [vmem:[%s117 + $0x608] sm:$0xff]
        %v333 = vld [vmem:[%s117 + $0x610] sm:$0xff]
        %v334 = vld [vmem:[%s117 + $0x618] sm:$0xff]
        %v335 = vld [vmem:[%s117 + $0x620] sm:$0xff]
        %v336 = vld [vmem:[%s117 + $0x628] sm:$0xff]
        %v337 = vld [vmem:[%s117 + $0x630] sm:$0xff]
        %v338 = vld [vmem:[%s117 + $0x638] sm:$0xff]
        %v339 = vld [vmem:[%s117 + $0x640] sm:$0xff]
        %v340 = vld [vmem:[%s117 + $0x648] sm:$0xff]
        %v341 = vld [vmem:[%s117 + $0x650] sm:$0xff]
        %v342 = vld [vmem:[%s117 + $0x658] sm:$0xff]
        %v343 = vld [vmem:[%s117 + $0x660] sm:$0xff]
        %v344 = vld [vmem:[%s117 + $0x668] sm:$0xff]
        %v345 = vld [vmem:[%s117 + $0x670] sm:$0xff]
        %v346 = vld [vmem:[%s117 + $0x678] sm:$0xff]
        %v347 = vld [vmem:[%s117 + $0x680] sm:$0xff]
        %v348 = vld [vmem:[%s117 + $0x688] sm:$0xff]
        %v349 = vld [vmem:[%s117 + $0x690] sm:$0xff]
        %v350 = vld [vmem:[%s117 + $0x698] sm:$0xff]
        %v351 = vld [vmem:[%s117 + $0x6a0] sm:$0xff]
        %v352 = vld [vmem:[%s117 + $0x6a8] sm:$0xff]
        %v353 = vld [vmem:[%s117 + $0x6b0] sm:$0xff]
        %v354 = vld [vmem:[%s117 + $0x6b8] sm:$0xff]
        %v355 = vld [vmem:[%s117 + $0x6c0] sm:$0xff]
        %v356 = vld [vmem:[%s117 + $0x6c8] sm:$0xff]
        %v357 = vld [vmem:[%s117 + $0x6d0] sm:$0xff]
        %v358 = vld [vmem:[%s117 + $0x6d8] sm:$0xff]
        %v359 = vld [vmem:[%s117 + $0x6e0] sm:$0xff]
        %v360 = vld [vmem:[%s117 + $0x6e8] sm:$0xff]
        %v361 = vld [vmem:[%s117 + $0x6f0] sm:$0xff]
        %v362 = vld [vmem:[%s117 + $0x6f8] sm:$0xff]
        %v363 = vld [vmem:[%s117 + $0x700] sm:$0xff]
        %v364 = vld [vmem:[%s117 + $0x708] sm:$0xff]
        %v365 = vld [vmem:[%s117 + $0x710] sm:$0xff]
        %v366 = vld [vmem:[%s117 + $0x718] sm:$0xff]
        %v367 = vld [vmem:[%s117 + $0x720] sm:$0xff]
        %v368 = vld [vmem:[%s117 + $0x728] sm:$0xff]
        %v369 = vld [vmem:[%s117 + $0x730] sm:$0xff]
        %v370 = vld [vmem:[%s117 + $0x738] sm:$0xff]
        %v371 = vld [vmem:[%s117 + $0x740] sm:$0xff]
        %v372 = vld [vmem:[%s117 + $0x748] sm:$0xff]
        %v373 = vld [vmem:[%s117 + $0x750] sm:$0xff]
        %v374 = vld [vmem:[%s117 + $0x758] sm:$0xff]
        %v375 = vld [vmem:[%s117 + $0x760] sm:$0xff]
        %v376 = vld [vmem:[%s117 + $0x768] sm:$0xff]
        %v377 = vld [vmem:[%s117 + $0x770] sm:$0xff]
        %v378 = vld [vmem:[%s117 + $0x778] sm:$0xff]
        %v379 = vld [vmem:[%s117 + $0x780] sm:$0xff]
        %v380 = vld [vmem:[%s117 + $0x788] sm:$0xff]
        %v381 = vld [vmem:[%s117 + $0x790] sm:$0xff]
        %v382 = vld [vmem:[%s117 + $0x798] sm:$0xff]
        %v383 = vld [vmem:[%s117 + $0x7a0] sm:$0xff]
        %v384 = vld [vmem:[%s117 + $0x7a8] sm:$0xff]
        %v385 = vld [vmem:[%s117 + $0x7b0] sm:$0xff]
        %v386 = vld [vmem:[%s117 + $0x7b8] sm:$0xff]
        %v387 = vld [vmem:[%s117 + $0x7c0] sm:$0xff]
        %v388 = vld [vmem:[%s117 + $0x7c8] sm:$0xff]
        %v389 = vld [vmem:[%s117 + $0x7d0] sm:$0xff]
        %v390 = vld [vmem:[%s117 + $0x7d8] sm:$0xff]
        %v391 = vld [vmem:[%s117 + $0x7e0] sm:$0xff]
        %v392 = vld [vmem:[%s117 + $0x7e8] sm:$0xff]
        %v393 = vld [vmem:[%s117 + $0x7f0] sm:$0xff]
        %v394 = vld [vmem:[%s117 + $0x7f8] sm:$0xff]
        %v395 = vmin.f32 %v139, 6.0
        %v396 = vmin.f32 %v140, 6.0
        %v397 = vmin.f32 %v141, 6.0
        %v398 = vmin.f32 %v142, 6.0
        %v399 = vmin.f32 %v143, 6.0
        %v400 = vmin.f32 %v144, 6.0
        %v401 = vmin.f32 %v145, 6.0
        %v402 = vmin.f32 %v146, 6.0
        %v403 = vmin.f32 %v147, 6.0
        %v404 = vmin.f32 %v148, 6.0
        %v405 = vmin.f32 %v149, 6.0
        %v406 = vmin.f32 %v150, 6.0
        %v407 = vmin.f32 %v151, 6.0
        %v408 = vmin.f32 %v152, 6.0
        %v409 = vmin.f32 %v153, 6.0
        %v410 = vmin.f32 %v154, 6.0
        %v411 = vmin.f32 %v155, 6.0
        %v412 = vmin.f32 %v156, 6.0
        %v413 = vmin.f32 %v157, 6.0
        %v414 = vmin.f32 %v158, 6.0
        %v415 = vmin.f32 %v159, 6.0
        %v416 = vmin.f32 %v160, 6.0
        %v417 = vmin.f32 %v161, 6.0
        %v418 = vmin.f32 %v162, 6.0
        %v419 = vmin.f32 %v163, 6.0
        %v420 = vmin.f32 %v164, 6.0
        %v421 = vmin.f32 %v165, 6.0
        %v422 = vmin.f32 %v166, 6.0
        %v423 = vmin.f32 %v167, 6.0
        %v424 = vmin.f32 %v168, 6.0
        %v425 = vmin.f32 %v169, 6.0
        %v426 = vmin.f32 %v170, 6.0
        %v427 = vmin.f32 %v171, 6.0
        %v428 = vmin.f32 %v172, 6.0
        %v429 = vmin.f32 %v173, 6.0
        %v430 = vmin.f32 %v174, 6.0
        %v431 = vmin.f32 %v175, 6.0
        %v432 = vmin.f32 %v176, 6.0
        %v433 = vmin.f32 %v177, 6.0
        %v434 = vmin.f32 %v178, 6.0
        %v435 = vmin.f32 %v179, 6.0
        %v436 = vmin.f32 %v180, 6.0
        %v437 = vmin.f32 %v181, 6.0
        %v438 = vmin.f32 %v182, 6.0
        %v439 = vmin.f32 %v183, 6.0
        %v440 = vmin.f32 %v184, 6.0
        %v441 = vmin.f32 %v185, 6.0
        %v442 = vmin.f32 %v186, 6.0
        %v443 = vmin.f32 %v187, 6.0
        %v444 = vmin.f32 %v188, 6.0
        %v445 = vmin.f32 %v189, 6.0
        %v446 = vmin.f32 %v190, 6.0
        %v447 = vmin.f32 %v191, 6.0
        %v448 = vmin.f32 %v192, 6.0
        %v449 = vmin.f32 %v193, 6.0
        %v450 = vmin.f32 %v194, 6.0
        %v451 = vmin.f32 %v195, 6.0
        %v452 = vmin.f32 %v196, 6.0
        %v453 = vmin.f32 %v197, 6.0
        %v454 = vmin.f32 %v198, 6.0
        %v455 = vmin.f32 %v199, 6.0
        %v456 = vmin.f32 %v200, 6.0
        %v457 = vmin.f32 %v201, 6.0
        %v458 = vmin.f32 %v202, 6.0
        %v459 = vmin.f32 %v203, 6.0
        %v460 = vmin.f32 %v204, 6.0
        %v461 = vmin.f32 %v205, 6.0
        %v462 = vmin.f32 %v206, 6.0
        %v463 = vmin.f32 %v207, 6.0
        %v464 = vmin.f32 %v208, 6.0
        %v465 = vmin.f32 %v209, 6.0
        %v466 = vmin.f32 %v210, 6.0
        %v467 = vmin.f32 %v211, 6.0
        %v468 = vmin.f32 %v212, 6.0
        %v469 = vmin.f32 %v213, 6.0
        %v470 = vmin.f32 %v214, 6.0
        %v471 = vmin.f32 %v215, 6.0
        %v472 = vmin.f32 %v216, 6.0
        %v473 = vmin.f32 %v217, 6.0
        %v474 = vmin.f32 %v218, 6.0
        %v475 = vmin.f32 %v219, 6.0
        %v476 = vmin.f32 %v220, 6.0
        %v477 = vmin.f32 %v221, 6.0
        %v478 = vmin.f32 %v222, 6.0
        %v479 = vmin.f32 %v223, 6.0
        %v480 = vmin.f32 %v224, 6.0
        %v481 = vmin.f32 %v225, 6.0
        %v482 = vmin.f32 %v226, 6.0
        %v483 = vmin.f32 %v227, 6.0
        %v484 = vmin.f32 %v228, 6.0
        %v485 = vmin.f32 %v229, 6.0
        %v486 = vmin.f32 %v230, 6.0
        %v487 = vmin.f32 %v231, 6.0
        %v488 = vmin.f32 %v232, 6.0
        %v489 = vmin.f32 %v233, 6.0
        %v490 = vmin.f32 %v234, 6.0
        %v491 = vmin.f32 %v235, 6.0
        %v492 = vmin.f32 %v236, 6.0
        %v493 = vmin.f32 %v237, 6.0
        %v494 = vmin.f32 %v238, 6.0
        %v495 = vmin.f32 %v239, 6.0
        %v496 = vmin.f32 %v240, 6.0
        %v497 = vmin.f32 %v241, 6.0
        %v498 = vmin.f32 %v242, 6.0
        %v499 = vmin.f32 %v243, 6.0
        %v500 = vmin.f32 %v244, 6.0
        %v501 = vmin.f32 %v245, 6.0
        %v502 = vmin.f32 %v246, 6.0
        %v503 = vmin.f32 %v247, 6.0
        %v504 = vmin.f32 %v248, 6.0
        %v505 = vmin.f32 %v249, 6.0
        %v506 = vmin.f32 %v250, 6.0
        %v507 = vmin.f32 %v251, 6.0
        %v508 = vmin.f32 %v252, 6.0
        %v509 = vmin.f32 %v253, 6.0
        %v510 = vmin.f32 %v254, 6.0
        %v511 = vmin.f32 %v255, 6.0
        %v512 = vmin.f32 %v256, 6.0
        %v513 = vmin.f32 %v257, 6.0
        %v514 = vmin.f32 %v258, 6.0
        %v515 = vmin.f32 %v259, 6.0
        %v516 = vmin.f32 %v260, 6.0
        %v517 = vmin.f32 %v261, 6.0
        %v518 = vmin.f32 %v262, 6.0
        %v519 = vmin.f32 %v263, 6.0
        %v520 = vmin.f32 %v264, 6.0
        %v521 = vmin.f32 %v265, 6.0
        %v522 = vmin.f32 %v266, 6.0
        %v523 = vmin.f32 %v267, 6.0
        %v524 = vmin.f32 %v268, 6.0
        %v525 = vmin.f32 %v269, 6.0
        %v526 = vmin.f32 %v270, 6.0
        %v527 = vmin.f32 %v271, 6.0
        %v528 = vmin.f32 %v272, 6.0
        %v529 = vmin.f32 %v273, 6.0
        %v530 = vmin.f32 %v274, 6.0
        %v531 = vmin.f32 %v275, 6.0
        %v532 = vmin.f32 %v276, 6.0
        %v533 = vmin.f32 %v277, 6.0
        %v534 = vmin.f32 %v278, 6.0
        %v535 = vmin.f32 %v279, 6.0
        %v536 = vmin.f32 %v280, 6.0
        %v537 = vmin.f32 %v281, 6.0
        %v538 = vmin.f32 %v282, 6.0
        %v539 = vmin.f32 %v283, 6.0
        %v540 = vmin.f32 %v284, 6.0
        %v541 = vmin.f32 %v285, 6.0
        %v542 = vmin.f32 %v286, 6.0
        %v543 = vmin.f32 %v287, 6.0
        %v544 = vmin.f32 %v288, 6.0
        %v545 = vmin.f32 %v289, 6.0
        %v546 = vmin.f32 %v290, 6.0
        %v547 = vmin.f32 %v291, 6.0
        %v548 = vmin.f32 %v292, 6.0
        %v549 = vmin.f32 %v293, 6.0
        %v550 = vmin.f32 %v294, 6.0
        %v551 = vmin.f32 %v295, 6.0
        %v552 = vmin.f32 %v296, 6.0
        %v553 = vmin.f32 %v297, 6.0
        %v554 = vmin.f32 %v298, 6.0
        %v555 = vmin.f32 %v299, 6.0
        %v556 = vmin.f32 %v300, 6.0
        %v557 = vmin.f32 %v301, 6.0
        %v558 = vmin.f32 %v302, 6.0
        %v559 = vmin.f32 %v303, 6.0
        %v560 = vmin.f32 %v304, 6.0
        %v561 = vmin.f32 %v305, 6.0
        %v562 = vmin.f32 %v306, 6.0
        %v563 = vmin.f32 %v307, 6.0
        %v564 = vmin.f32 %v308, 6.0
        %v565 = vmin.f32 %v309, 6.0
        %v566 = vmin.f32 %v310, 6.0
        %v567 = vmin.f32 %v311, 6.0
        %v568 = vmin.f32 %v312, 6.0
        %v569 = vmin.f32 %v313, 6.0
        %v570 = vmin.f32 %v314, 6.0
        %v571 = vmin.f32 %v315, 6.0
        %v572 = vmin.f32 %v316, 6.0
        %v573 = vmin.f32 %v317, 6.0
        %v574 = vmin.f32 %v318, 6.0
        %v575 = vmin.f32 %v319, 6.0
        %v576 = vmin.f32 %v320, 6.0
        %v577 = vmin.f32 %v321, 6.0
        %v578 = vmin.f32 %v322, 6.0
        %v579 = vmin.f32 %v323, 6.0
        %v580 = vmin.f32 %v324, 6.0
        %v581 = vmin.f32 %v325, 6.0
        %v582 = vmin.f32 %v326, 6.0
        %v583 = vmin.f32 %v327, 6.0
        %v584 = vmin.f32 %v328, 6.0
        %v585 = vmin.f32 %v329, 6.0
        %v586 = vmin.f32 %v330, 6.0
        %v587 = vmin.f32 %v331, 6.0
        %v588 = vmin.f32 %v332, 6.0
        %v589 = vmin.f32 %v333, 6.0
        %v590 = vmin.f32 %v334, 6.0
        %v591 = vmin.f32 %v335, 6.0
        %v592 = vmin.f32 %v336, 6.0
        %v593 = vmin.f32 %v337, 6.0
        %v594 = vmin.f32 %v338, 6.0
        %v595 = vmin.f32 %v339, 6.0
        %v596 = vmin.f32 %v340, 6.0
        %v597 = vmin.f32 %v341, 6.0
        %v598 = vmin.f32 %v342, 6.0
        %v599 = vmin.f32 %v343, 6.0
        %v600 = vmin.f32 %v344, 6.0
        %v601 = vmin.f32 %v345, 6.0
        %v602 = vmin.f32 %v346, 6.0
        %v603 = vmin.f32 %v347, 6.0
        %v604 = vmin.f32 %v348, 6.0
        %v605 = vmin.f32 %v349, 6.0
        %v606 = vmin.f32 %v350, 6.0
        %v607 = vmin.f32 %v351, 6.0
        %v608 = vmin.f32 %v352, 6.0
        %v609 = vmin.f32 %v353, 6.0
        %v610 = vmin.f32 %v354, 6.0
        %v611 = vmin.f32 %v355, 6.0
        %v612 = vmin.f32 %v356, 6.0
        %v613 = vmin.f32 %v357, 6.0
        %v614 = vmin.f32 %v358, 6.0
        %v615 = vmin.f32 %v359, 6.0
        %v616 = vmin.f32 %v360, 6.0
        %v617 = vmin.f32 %v361, 6.0
        %v618 = vmin.f32 %v362, 6.0
        %v619 = vmin.f32 %v363, 6.0
        %v620 = vmin.f32 %v364, 6.0
        %v621 = vmin.f32 %v365, 6.0
        %v622 = vmin.f32 %v366, 6.0
        %v623 = vmin.f32 %v367, 6.0
        %v624 = vmin.f32 %v368, 6.0
        %v625 = vmin.f32 %v369, 6.0
        %v626 = vmin.f32 %v370, 6.0
        %v627 = vmin.f32 %v371, 6.0
        %v628 = vmin.f32 %v372, 6.0
        %v629 = vmin.f32 %v373, 6.0
        %v630 = vmin.f32 %v374, 6.0
        %v631 = vmin.f32 %v375, 6.0
        %v632 = vmin.f32 %v376, 6.0
        %v633 = vmin.f32 %v377, 6.0
        %v634 = vmin.f32 %v378, 6.0
        %v635 = vmin.f32 %v379, 6.0
        %v636 = vmin.f32 %v380, 6.0
        %v637 = vmin.f32 %v381, 6.0
        %v638 = vmin.f32 %v382, 6.0
        %v639 = vmin.f32 %v383, 6.0
        %v640 = vmin.f32 %v384, 6.0
        %v641 = vmin.f32 %v385, 6.0
        %v642 = vmin.f32 %v386, 6.0
        %v643 = vmin.f32 %v387, 6.0
        %v644 = vmin.f32 %v388, 6.0
        %v645 = vmin.f32 %v389, 6.0
        %v646 = vmin.f32 %v390, 6.0
        %v647 = vmin.f32 %v391, 6.0
        %v648 = vmin.f32 %v392, 6.0
        %v649 = vmin.f32 %v393, 6.0
        %v650 = vmin.f32 %v394, 6.0
        %v651 = vmul.f32 %v395, 0.16666667
        %v652 = vmul.f32 %v396, 0.16666667
        %v653 = vmul.f32 %v397, 0.16666667
        %v654 = vmul.f32 %v398, 0.16666667
        %v655 = vmul.f32 %v399, 0.16666667
        %v656 = vmul.f32 %v400, 0.16666667
        %v657 = vmul.f32 %v401, 0.16666667
        %v658 = vmul.f32 %v402, 0.16666667
        %v659 = vmul.f32 %v403, 0.16666667
        %v660 = vmul.f32 %v404, 0.16666667
        %v661 = vmul.f32 %v405, 0.16666667
        %v662 = vmul.f32 %v406, 0.16666667
        %v663 = vmul.f32 %v407, 0.16666667
        %v664 = vmul.f32 %v408, 0.16666667
        %v665 = vmul.f32 %v409, 0.16666667
        %v666 = vmul.f32 %v410, 0.16666667
        %v667 = vmul.f32 %v411, 0.16666667
        %v668 = vmul.f32 %v412, 0.16666667
        %v669 = vmul.f32 %v413, 0.16666667
        %v670 = vmul.f32 %v414, 0.16666667
        %v671 = vmul.f32 %v415, 0.16666667
        %v672 = vmul.f32 %v416, 0.16666667
        %v673 = vmul.f32 %v417, 0.16666667
        %v674 = vmul.f32 %v418, 0.16666667
        %v675 = vmul.f32 %v419, 0.16666667
        %v676 = vmul.f32 %v420, 0.16666667
        %v677 = vmul.f32 %v421, 0.16666667
        %v678 = vmul.f32 %v422, 0.16666667
        %v679 = vmul.f32 %v423, 0.16666667
        %v680 = vmul.f32 %v424, 0.16666667
        %v681 = vmul.f32 %v425, 0.16666667
        %v682 = vmul.f32 %v426, 0.16666667
        %v683 = vmul.f32 %v427, 0.16666667
        %v684 = vmul.f32 %v428, 0.16666667
        %v685 = vmul.f32 %v429, 0.16666667
        %v686 = vmul.f32 %v430, 0.16666667
        %v687 = vmul.f32 %v431, 0.16666667
        %v688 = vmul.f32 %v432, 0.16666667
        %v689 = vmul.f32 %v433, 0.16666667
        %v690 = vmul.f32 %v434, 0.16666667
        %v691 = vmul.f32 %v435, 0.16666667
        %v692 = vmul.f32 %v436, 0.16666667
        %v693 = vmul.f32 %v437, 0.16666667
        %v694 = vmul.f32 %v438, 0.16666667
        %v695 = vmul.f32 %v439, 0.16666667
        %v696 = vmul.f32 %v440, 0.16666667
        %v697 = vmul.f32 %v441, 0.16666667
        %v698 = vmul.f32 %v442, 0.16666667
        %v699 = vmul.f32 %v443, 0.16666667
        %v700 = vmul.f32 %v444, 0.16666667
        %v701 = vmul.f32 %v445, 0.16666667
        %v702 = vmul.f32 %v446, 0.16666667
        %v703 = vmul.f32 %v447, 0.16666667
        %v704 = vmul.f32 %v448, 0.16666667
        %v705 = vmul.f32 %v449, 0.16666667
        %v706 = vmul.f32 %v450, 0.16666667
        %v707 = vmul.f32 %v451, 0.16666667
        %v708 = vmul.f32 %v452, 0.16666667
        %v709 = vmul.f32 %v453, 0.16666667
        %v710 = vmul.f32 %v454, 0.16666667
        %v711 = vmul.f32 %v455, 0.16666667
        %v712 = vmul.f32 %v456, 0.16666667
        %v713 = vmul.f32 %v457, 0.16666667
        %v714 = vmul.f32 %v458, 0.16666667
        %v715 = vmul.f32 %v459, 0.16666667
        %v716 = vmul.f32 %v460, 0.16666667
        %v717 = vmul.f32 %v461, 0.16666667
        %v718 = vmul.f32 %v462, 0.16666667
        %v719 = vmul.f32 %v463, 0.16666667
        %v720 = vmul.f32 %v464, 0.16666667
        %v721 = vmul.f32 %v465, 0.16666667
        %v722 = vmul.f32 %v466, 0.16666667
        %v723 = vmul.f32 %v467, 0.16666667
        %v724 = vmul.f32 %v468, 0.16666667
        %v725 = vmul.f32 %v469, 0.16666667
        %v726 = vmul.f32 %v470, 0.16666667
        %v727 = vmul.f32 %v471, 0.16666667
        %v728 = vmul.f32 %v472, 0.16666667
        %v729 = vmul.f32 %v473, 0.16666667
        %v730 = vmul.f32 %v474, 0.16666667
        %v731 = vmul.f32 %v475, 0.16666667
        %v732 = vmul.f32 %v476, 0.16666667
        %v733 = vmul.f32 %v477, 0.16666667
        %v734 = vmul.f32 %v478, 0.16666667
        %v735 = vmul.f32 %v479, 0.16666667
        %v736 = vmul.f32 %v480, 0.16666667
        %v737 = vmul.f32 %v481, 0.16666667
        %v738 = vmul.f32 %v482, 0.16666667
        %v739 = vmul.f32 %v483, 0.16666667
        %v740 = vmul.f32 %v484, 0.16666667
        %v741 = vmul.f32 %v485, 0.16666667
        %v742 = vmul.f32 %v486, 0.16666667
        %v743 = vmul.f32 %v487, 0.16666667
        %v744 = vmul.f32 %v488, 0.16666667
        %v745 = vmul.f32 %v489, 0.16666667
        %v746 = vmul.f32 %v490, 0.16666667
        %v747 = vmul.f32 %v491, 0.16666667
        %v748 = vmul.f32 %v492, 0.16666667
        %v749 = vmul.f32 %v493, 0.16666667
        %v750 = vmul.f32 %v494, 0.16666667
        %v751 = vmul.f32 %v495, 0.16666667
        %v752 = vmul.f32 %v496, 0.16666667
        %v753 = vmul.f32 %v497, 0.16666667
        %v754 = vmul.f32 %v498, 0.16666667
        %v755 = vmul.f32 %v499, 0.16666667
        %v756 = vmul.f32 %v500, 0.16666667
        %v757 = vmul.f32 %v501, 0.16666667
        %v758 = vmul.f32 %v502, 0.16666667
        %v759 = vmul.f32 %v503, 0.16666667
        %v760 = vmul.f32 %v504, 0.16666667
        %v761 = vmul.f32 %v505, 0.16666667
        %v762 = vmul.f32 %v506, 0.16666667
        %v763 = vmul.f32 %v507, 0.16666667
        %v764 = vmul.f32 %v508, 0.16666667
        %v765 = vmul.f32 %v509, 0.16666667
        %v766 = vmul.f32 %v510, 0.16666667
        %v767 = vmul.f32 %v511, 0.16666667
        %v768 = vmul.f32 %v512, 0.16666667
        %v769 = vmul.f32 %v513, 0.16666667
        %v770 = vmul.f32 %v514, 0.16666667
        %v771 = vmul.f32 %v515, 0.16666667
        %v772 = vmul.f32 %v516, 0.16666667
        %v773 = vmul.f32 %v517, 0.16666667
        %v774 = vmul.f32 %v518, 0.16666667
        %v775 = vmul.f32 %v519, 0.16666667
        %v776 = vmul.f32 %v520, 0.16666667
        %v777 = vmul.f32 %v521, 0.16666667
        %v778 = vmul.f32 %v522, 0.16666667
        %v779 = vmul.f32 %v523, 0.16666667
        %v780 = vmul.f32 %v524, 0.16666667
        %v781 = vmul.f32 %v525, 0.16666667
        %v782 = vmul.f32 %v526, 0.16666667
        %v783 = vmul.f32 %v527, 0.16666667
        %v784 = vmul.f32 %v528, 0.16666667
        %v785 = vmul.f32 %v529, 0.16666667
        %v786 = vmul.f32 %v530, 0.16666667
        %v787 = vmul.f32 %v531, 0.16666667
        %v788 = vmul.f32 %v532, 0.16666667
        %v789 = vmul.f32 %v533, 0.16666667
        %v790 = vmul.f32 %v534, 0.16666667
        %v791 = vmul.f32 %v535, 0.16666667
        %v792 = vmul.f32 %v536, 0.16666667
        %v793 = vmul.f32 %v537, 0.16666667
        %v794 = vmul.f32 %v538, 0.16666667
        %v795 = vmul.f32 %v539, 0.16666667
        %v796 = vmul.f32 %v540, 0.16666667
        %v797 = vmul.f32 %v541, 0.16666667
        %v798 = vmul.f32 %v542, 0.16666667
        %v799 = vmul.f32 %v543, 0.16666667
        %v800 = vmul.f32 %v544, 0.16666667
        %v801 = vmul.f32 %v545, 0.16666667
        %v802 = vmul.f32 %v546, 0.16666667
        %v803 = vmul.f32 %v547, 0.16666667
        %v804 = vmul.f32 %v548, 0.16666667
        %v805 = vmul.f32 %v549, 0.16666667
        %v806 = vmul.f32 %v550, 0.16666667
        %v807 = vmul.f32 %v551, 0.16666667
        %v808 = vmul.f32 %v552, 0.16666667
        %v809 = vmul.f32 %v553, 0.16666667
        %v810 = vmul.f32 %v554, 0.16666667
        %v811 = vmul.f32 %v555, 0.16666667
        %v812 = vmul.f32 %v556, 0.16666667
        %v813 = vmul.f32 %v557, 0.16666667
        %v814 = vmul.f32 %v558, 0.16666667
        %v815 = vmul.f32 %v559, 0.16666667
        %v816 = vmul.f32 %v560, 0.16666667
        %v817 = vmul.f32 %v561, 0.16666667
        %v818 = vmul.f32 %v562, 0.16666667
        %v819 = vmul.f32 %v563, 0.16666667
        %v820 = vmul.f32 %v564, 0.16666667
        %v821 = vmul.f32 %v565, 0.16666667
        %v822 = vmul.f32 %v566, 0.16666667
        %v823 = vmul.f32 %v567, 0.16666667
        %v824 = vmul.f32 %v568, 0.16666667
        %v825 = vmul.f32 %v569, 0.16666667
        %v826 = vmul.f32 %v570, 0.16666667
        %v827 = vmul.f32 %v571, 0.16666667
        %v828 = vmul.f32 %v572, 0.16666667
        %v829 = vmul.f32 %v573, 0.16666667
        %v830 = vmul.f32 %v574, 0.16666667
        %v831 = vmul.f32 %v575, 0.16666667
        %v832 = vmul.f32 %v576, 0.16666667
        %v833 = vmul.f32 %v577, 0.16666667
        %v834 = vmul.f32 %v578, 0.16666667
        %v835 = vmul.f32 %v579, 0.16666667
        %v836 = vmul.f32 %v580, 0.16666667
        %v837 = vmul.f32 %v581, 0.16666667
        %v838 = vmul.f32 %v582, 0.16666667
        %v839 = vmul.f32 %v583, 0.16666667
        %v840 = vmul.f32 %v584, 0.16666667
        %v841 = vmul.f32 %v585, 0.16666667
        %v842 = vmul.f32 %v586, 0.16666667
        %v843 = vmul.f32 %v587, 0.16666667
        %v844 = vmul.f32 %v588, 0.16666667
        %v845 = vmul.f32 %v589, 0.16666667
        %v846 = vmul.f32 %v590, 0.16666667
        %v847 = vmul.f32 %v591, 0.16666667
        %v848 = vmul.f32 %v592, 0.16666667
        %v849 = vmul.f32 %v593, 0.16666667
        %v850 = vmul.f32 %v594, 0.16666667
        %v851 = vmul.f32 %v595, 0.16666667
        %v852 = vmul.f32 %v596, 0.16666667
        %v853 = vmul.f32 %v597, 0.16666667
        %v854 = vmul.f32 %v598, 0.16666667
        %v855 = vmul.f32 %v599, 0.16666667
        %v856 = vmul.f32 %v600, 0.16666667
        %v857 = vmul.f32 %v601, 0.16666667
        %v858 = vmul.f32 %v602, 0.16666667
        %v859 = vmul.f32 %v603, 0.16666667
        %v860 = vmul.f32 %v604, 0.16666667
        %v861 = vmul.f32 %v605, 0.16666667
        %v862 = vmul.f32 %v606, 0.16666667
        %v863 = vmul.f32 %v607, 0.16666667
        %v864 = vmul.f32 %v608, 0.16666667
        %v865 = vmul.f32 %v609, 0.16666667
        %v866 = vmul.f32 %v610, 0.16666667
        %v867 = vmul.f32 %v611, 0.16666667
        %v868 = vmul.f32 %v612, 0.16666667
        %v869 = vmul.f32 %v613, 0.16666667
        %v870 = vmul.f32 %v614, 0.16666667
        %v871 = vmul.f32 %v615, 0.16666667
        %v872 = vmul.f32 %v616, 0.16666667
        %v873 = vmul.f32 %v617, 0.16666667
        %v874 = vmul.f32 %v618, 0.16666667
        %v875 = vmul.f32 %v619, 0.16666667
        %v876 = vmul.f32 %v620, 0.16666667
        %v877 = vmul.f32 %v621, 0.16666667
        %v878 = vmul.f32 %v622, 0.16666667
        %v879 = vmul.f32 %v623, 0.16666667
        %v880 = vmul.f32 %v624, 0.16666667
        %v881 = vmul.f32 %v625, 0.16666667
        %v882 = vmul.f32 %v626, 0.16666667
        %v883 = vmul.f32 %v627, 0.16666667
        %v884 = vmul.f32 %v628, 0.16666667
        %v885 = vmul.f32 %v629, 0.16666667
        %v886 = vmul.f32 %v630, 0.16666667
        %v887 = vmul.f32 %v631, 0.16666667
        %v888 = vmul.f32 %v632, 0.16666667
        %v889 = vmul.f32 %v633, 0.16666667
        %v890 = vmul.f32 %v634, 0.16666667
        %v891 = vmul.f32 %v635, 0.16666667
        %v892 = vmul.f32 %v636, 0.16666667
        %v893 = vmul.f32 %v637, 0.16666667
        %v894 = vmul.f32 %v638, 0.16666667
        %v895 = vmul.f32 %v639, 0.16666667
        %v896 = vmul.f32 %v640, 0.16666667
        %v897 = vmul.f32 %v641, 0.16666667
        %v898 = vmul.f32 %v642, 0.16666667
        %v899 = vmul.f32 %v643, 0.16666667
        %v900 = vmul.f32 %v644, 0.16666667
        %v901 = vmul.f32 %v645, 0.16666667
        %v902 = vmul.f32 %v646, 0.16666667
        %v903 = vmul.f32 %v647, 0.16666667
        %v904 = vmul.f32 %v648, 0.16666667
        %v905 = vmul.f32 %v649, 0.16666667
        %v906 = vmul.f32 %v650, 0.16666667
        %907 = vst [vmem:[%s136] sm:$0xff] %v651
        %908 = vst [vmem:[%s136 + $0x8] sm:$0xff] %v652
        %909 = vst [vmem:[%s136 + $0x10] sm:$0xff] %v653
        %910 = vst [vmem:[%s136 + $0x18] sm:$0xff] %v654
        %911 = vst [vmem:[%s136 + $0x20] sm:$0xff] %v655
        %912 = vst [vmem:[%s136 + $0x28] sm:$0xff] %v656
        %913 = vst [vmem:[%s136 + $0x30] sm:$0xff] %v657
        %914 = vst [vmem:[%s136 + $0x38] sm:$0xff] %v658
        %915 = vst [vmem:[%s136 + $0x40] sm:$0xff] %v659
        %916 = vst [vmem:[%s136 + $0x48] sm:$0xff] %v660
        %917 = vst [vmem:[%s136 + $0x50] sm:$0xff] %v661
        %918 = vst [vmem:[%s136 + $0x58] sm:$0xff] %v662
        %919 = vst [vmem:[%s136 + $0x60] sm:$0xff] %v663
        %920 = vst [vmem:[%s136 + $0x68] sm:$0xff] %v664
        %921 = vst [vmem:[%s136 + $0x70] sm:$0xff] %v665
        %922 = vst [vmem:[%s136 + $0x78] sm:$0xff] %v666
        %923 = vst [vmem:[%s136 + $0x80] sm:$0xff] %v667
        %924 = vst [vmem:[%s136 + $0x88] sm:$0xff] %v668
        %925 = vst [vmem:[%s136 + $0x90] sm:$0xff] %v669
        %926 = vst [vmem:[%s136 + $0x98] sm:$0xff] %v670
        %927 = vst [vmem:[%s136 + $0xa0] sm:$0xff] %v671
        %928 = vst [vmem:[%s136 + $0xa8] sm:$0xff] %v672
        %929 = vst [vmem:[%s136 + $0xb0] sm:$0xff] %v673
        %930 = vst [vmem:[%s136 + $0xb8] sm:$0xff] %v674
        %931 = vst [vmem:[%s136 + $0xc0] sm:$0xff] %v675
        %932 = vst [vmem:[%s136 + $0xc8] sm:$0xff] %v676
        %933 = vst [vmem:[%s136 + $0xd0] sm:$0xff] %v677
        %934 = vst [vmem:[%s136 + $0xd8] sm:$0xff] %v678
        %935 = vst [vmem:[%s136 + $0xe0] sm:$0xff] %v679
        %936 = vst [vmem:[%s136 + $0xe8] sm:$0xff] %v680
        %937 = vst [vmem:[%s136 + $0xf0] sm:$0xff] %v681
        %938 = vst [vmem:[%s136 + $0xf8] sm:$0xff] %v682
        %939 = vst [vmem:[%s136 + $0x100] sm:$0xff] %v683
        %940 = vst [vmem:[%s136 + $0x108] sm:$0xff] %v684
        %941 = vst [vmem:[%s136 + $0x110] sm:$0xff] %v685
        %942 = vst [vmem:[%s136 + $0x118] sm:$0xff] %v686
        %943 = vst [vmem:[%s136 + $0x120] sm:$0xff] %v687
        %944 = vst [vmem:[%s136 + $0x128] sm:$0xff] %v688
        %945 = vst [vmem:[%s136 + $0x130] sm:$0xff] %v689
        %946 = vst [vmem:[%s136 + $0x138] sm:$0xff] %v690
        %947 = vst [vmem:[%s136 + $0x140] sm:$0xff] %v691
        %948 = vst [vmem:[%s136 + $0x148] sm:$0xff] %v692
        %949 = vst [vmem:[%s136 + $0x150] sm:$0xff] %v693
        %950 = vst [vmem:[%s136 + $0x158] sm:$0xff] %v694
        %951 = vst [vmem:[%s136 + $0x160] sm:$0xff] %v695
        %952 = vst [vmem:[%s136 + $0x168] sm:$0xff] %v696
        %953 = vst [vmem:[%s136 + $0x170] sm:$0xff] %v697
        %954 = vst [vmem:[%s136 + $0x178] sm:$0xff] %v698
        %955 = vst [vmem:[%s136 + $0x180] sm:$0xff] %v699
        %956 = vst [vmem:[%s136 + $0x188] sm:$0xff] %v700
        %957 = vst [vmem:[%s136 + $0x190] sm:$0xff] %v701
        %958 = vst [vmem:[%s136 + $0x198] sm:$0xff] %v702
        %959 = vst [vmem:[%s136 + $0x1a0] sm:$0xff] %v703
        %960 = vst [vmem:[%s136 + $0x1a8] sm:$0xff] %v704
        %961 = vst [vmem:[%s136 + $0x1b0] sm:$0xff] %v705
        %962 = vst [vmem:[%s136 + $0x1b8] sm:$0xff] %v706
        %963 = vst [vmem:[%s136 + $0x1c0] sm:$0xff] %v707
        %964 = vst [vmem:[%s136 + $0x1c8] sm:$0xff] %v708
        %965 = vst [vmem:[%s136 + $0x1d0] sm:$0xff] %v709
        %966 = vst [vmem:[%s136 + $0x1d8] sm:$0xff] %v710
        %967 = vst [vmem:[%s136 + $0x1e0] sm:$0xff] %v711
        %968 = vst [vmem:[%s136 + $0x1e8] sm:$0xff] %v712
        %969 = vst [vmem:[%s136 + $0x1f0] sm:$0xff] %v713
        %970 = vst [vmem:[%s136 + $0x1f8] sm:$0xff] %v714
        %971 = vst [vmem:[%s136 + $0x200] sm:$0xff] %v715
        %972 = vst [vmem:[%s136 + $0x208] sm:$0xff] %v716
        %973 = vst [vmem:[%s136 + $0x210] sm:$0xff] %v717
        %974 = vst [vmem:[%s136 + $0x218] sm:$0xff] %v718
        %975 = vst [vmem:[%s136 + $0x220] sm:$0xff] %v719
        %976 = vst [vmem:[%s136 + $0x228] sm:$0xff] %v720
        %977 = vst [vmem:[%s136 + $0x230] sm:$0xff] %v721
        %978 = vst [vmem:[%s136 + $0x238] sm:$0xff] %v722
        %979 = vst [vmem:[%s136 + $0x240] sm:$0xff] %v723
        %980 = vst [vmem:[%s136 + $0x248] sm:$0xff] %v724
        %981 = vst [vmem:[%s136 + $0x250] sm:$0xff] %v725
        %982 = vst [vmem:[%s136 + $0x258] sm:$0xff] %v726
        %983 = vst [vmem:[%s136 + $0x260] sm:$0xff] %v727
        %984 = vst [vmem:[%s136 + $0x268] sm:$0xff] %v728
        %985 = vst [vmem:[%s136 + $0x270] sm:$0xff] %v729
        %986 = vst [vmem:[%s136 + $0x278] sm:$0xff] %v730
        %987 = vst [vmem:[%s136 + $0x280] sm:$0xff] %v731
        %988 = vst [vmem:[%s136 + $0x288] sm:$0xff] %v732
        %989 = vst [vmem:[%s136 + $0x290] sm:$0xff] %v733
        %990 = vst [vmem:[%s136 + $0x298] sm:$0xff] %v734
        %991 = vst [vmem:[%s136 + $0x2a0] sm:$0xff] %v735
        %992 = vst [vmem:[%s136 + $0x2a8] sm:$0xff] %v736
        %993 = vst [vmem:[%s136 + $0x2b0] sm:$0xff] %v737
        %994 = vst [vmem:[%s136 + $0x2b8] sm:$0xff] %v738
        %995 = vst [vmem:[%s136 + $0x2c0] sm:$0xff] %v739
        %996 = vst [vmem:[%s136 + $0x2c8] sm:$0xff] %v740
        %997 = vst [vmem:[%s136 + $0x2d0] sm:$0xff] %v741
        %998 = vst [vmem:[%s136 + $0x2d8] sm:$0xff] %v742
        %999 = vst [vmem:[%s136 + $0x2e0] sm:$0xff] %v743
        %1000 = vst [vmem:[%s136 + $0x2e8] sm:$0xff] %v744
        %1001 = vst [vmem:[%s136 + $0x2f0] sm:$0xff] %v745
        %1002 = vst [vmem:[%s136 + $0x2f8] sm:$0xff] %v746
        %1003 = vst [vmem:[%s136 + $0x300] sm:$0xff] %v747
        %1004 = vst [vmem:[%s136 + $0x308] sm:$0xff] %v748
        %1005 = vst [vmem:[%s136 + $0x310] sm:$0xff] %v749
        %1006 = vst [vmem:[%s136 + $0x318] sm:$0xff] %v750
        %1007 = vst [vmem:[%s136 + $0x320] sm:$0xff] %v751
        %1008 = vst [vmem:[%s136 + $0x328] sm:$0xff] %v752
        %1009 = vst [vmem:[%s136 + $0x330] sm:$0xff] %v753
        %1010 = vst [vmem:[%s136 + $0x338] sm:$0xff] %v754
        %1011 = vst [vmem:[%s136 + $0x340] sm:$0xff] %v755
        %1012 = vst [vmem:[%s136 + $0x348] sm:$0xff] %v756
        %1013 = vst [vmem:[%s136 + $0x350] sm:$0xff] %v757
        %1014 = vst [vmem:[%s136 + $0x358] sm:$0xff] %v758
        %1015 = vst [vmem:[%s136 + $0x360] sm:$0xff] %v759
        %1016 = vst [vmem:[%s136 + $0x368] sm:$0xff] %v760
        %1017 = vst [vmem:[%s136 + $0x370] sm:$0xff] %v761
        %1018 = vst [vmem:[%s136 + $0x378] sm:$0xff] %v762
        %1019 = vst [vmem:[%s136 + $0x380] sm:$0xff] %v763
        %1020 = vst [vmem:[%s136 + $0x388] sm:$0xff] %v764
        %1021 = vst [vmem:[%s136 + $0x390] sm:$0xff] %v765
        %1022 = vst [vmem:[%s136 + $0x398] sm:$0xff] %v766
        %1023 = vst [vmem:[%s136 + $0x3a0] sm:$0xff] %v767
        %1024 = vst [vmem:[%s136 + $0x3a8] sm:$0xff] %v768
        %1025 = vst [vmem:[%s136 + $0x3b0] sm:$0xff] %v769
        %1026 = vst [vmem:[%s136 + $0x3b8] sm:$0xff] %v770
        %1027 = vst [vmem:[%s136 + $0x3c0] sm:$0xff] %v771
        %1028 = vst [vmem:[%s136 + $0x3c8] sm:$0xff] %v772
        %1029 = vst [vmem:[%s136 + $0x3d0] sm:$0xff] %v773
        %1030 = vst [vmem:[%s136 + $0x3d8] sm:$0xff] %v774
        %1031 = vst [vmem:[%s136 + $0x3e0] sm:$0xff] %v775
        %1032 = vst [vmem:[%s136 + $0x3e8] sm:$0xff] %v776
        %1033 = vst [vmem:[%s136 + $0x3f0] sm:$0xff] %v777
        %1034 = vst [vmem:[%s136 + $0x3f8] sm:$0xff] %v778
        %1035 = vst [vmem:[%s136 + $0x400] sm:$0xff] %v779
        %1036 = vst [vmem:[%s136 + $0x408] sm:$0xff] %v780
        %1037 = vst [vmem:[%s136 + $0x410] sm:$0xff] %v781
        %1038 = vst [vmem:[%s136 + $0x418] sm:$0xff] %v782
        %1039 = vst [vmem:[%s136 + $0x420] sm:$0xff] %v783
        %1040 = vst [vmem:[%s136 + $0x428] sm:$0xff] %v784
        %1041 = vst [vmem:[%s136 + $0x430] sm:$0xff] %v785
        %1042 = vst [vmem:[%s136 + $0x438] sm:$0xff] %v786
        %1043 = vst [vmem:[%s136 + $0x440] sm:$0xff] %v787
        %1044 = vst [vmem:[%s136 + $0x448] sm:$0xff] %v788
        %1045 = vst [vmem:[%s136 + $0x450] sm:$0xff] %v789
        %1046 = vst [vmem:[%s136 + $0x458] sm:$0xff] %v790
        %1047 = vst [vmem:[%s136 + $0x460] sm:$0xff] %v791
        %1048 = vst [vmem:[%s136 + $0x468] sm:$0xff] %v792
        %1049 = vst [vmem:[%s136 + $0x470] sm:$0xff] %v793
        %1050 = vst [vmem:[%s136 + $0x478] sm:$0xff] %v794
        %1051 = vst [vmem:[%s136 + $0x480] sm:$0xff] %v795
        %1052 = vst [vmem:[%s136 + $0x488] sm:$0xff] %v796
        %1053 = vst [vmem:[%s136 + $0x490] sm:$0xff] %v797
        %1054 = vst [vmem:[%s136 + $0x498] sm:$0xff] %v798
        %1055 = vst [vmem:[%s136 + $0x4a0] sm:$0xff] %v799
        %1056 = vst [vmem:[%s136 + $0x4a8] sm:$0xff] %v800
        %1057 = vst [vmem:[%s136 + $0x4b0] sm:$0xff] %v801
        %1058 = vst [vmem:[%s136 + $0x4b8] sm:$0xff] %v802
        %1059 = vst [vmem:[%s136 + $0x4c0] sm:$0xff] %v803
        %1060 = vst [vmem:[%s136 + $0x4c8] sm:$0xff] %v804
        %1061 = vst [vmem:[%s136 + $0x4d0] sm:$0xff] %v805
        %1062 = vst [vmem:[%s136 + $0x4d8] sm:$0xff] %v806
        %1063 = vst [vmem:[%s136 + $0x4e0] sm:$0xff] %v807
        %1064 = vst [vmem:[%s136 + $0x4e8] sm:$0xff] %v808
        %1065 = vst [vmem:[%s136 + $0x4f0] sm:$0xff] %v809
        %1066 = vst [vmem:[%s136 + $0x4f8] sm:$0xff] %v810
        %1067 = vst [vmem:[%s136 + $0x500] sm:$0xff] %v811
        %1068 = vst [vmem:[%s136 + $0x508] sm:$0xff] %v812
        %1069 = vst [vmem:[%s136 + $0x510] sm:$0xff] %v813
        %1070 = vst [vmem:[%s136 + $0x518] sm:$0xff] %v814
        %1071 = vst [vmem:[%s136 + $0x520] sm:$0xff] %v815
        %1072 = vst [vmem:[%s136 + $0x528] sm:$0xff] %v816
        %1073 = vst [vmem:[%s136 + $0x530] sm:$0xff] %v817
        %1074 = vst [vmem:[%s136 + $0x538] sm:$0xff] %v818
        %1075 = vst [vmem:[%s136 + $0x540] sm:$0xff] %v819
        %1076 = vst [vmem:[%s136 + $0x548] sm:$0xff] %v820
        %1077 = vst [vmem:[%s136 + $0x550] sm:$0xff] %v821
        %1078 = vst [vmem:[%s136 + $0x558] sm:$0xff] %v822
        %1079 = vst [vmem:[%s136 + $0x560] sm:$0xff] %v823
        %1080 = vst [vmem:[%s136 + $0x568] sm:$0xff] %v824
        %1081 = vst [vmem:[%s136 + $0x570] sm:$0xff] %v825
        %1082 = vst [vmem:[%s136 + $0x578] sm:$0xff] %v826
        %1083 = vst [vmem:[%s136 + $0x580] sm:$0xff] %v827
        %1084 = vst [vmem:[%s136 + $0x588] sm:$0xff] %v828
        %1085 = vst [vmem:[%s136 + $0x590] sm:$0xff] %v829
        %1086 = vst [vmem:[%s136 + $0x598] sm:$0xff] %v830
        %1087 = vst [vmem:[%s136 + $0x5a0] sm:$0xff] %v831
        %1088 = vst [vmem:[%s136 + $0x5a8] sm:$0xff] %v832
        %1089 = vst [vmem:[%s136 + $0x5b0] sm:$0xff] %v833
        %1090 = vst [vmem:[%s136 + $0x5b8] sm:$0xff] %v834
        %1091 = vst [vmem:[%s136 + $0x5c0] sm:$0xff] %v835
        %1092 = vst [vmem:[%s136 + $0x5c8] sm:$0xff] %v836
        %1093 = vst [vmem:[%s136 + $0x5d0] sm:$0xff] %v837
        %1094 = vst [vmem:[%s136 + $0x5d8] sm:$0xff] %v838
        %1095 = vst [vmem:[%s136 + $0x5e0] sm:$0xff] %v839
        %1096 = vst [vmem:[%s136 + $0x5e8] sm:$0xff] %v840
        %1097 = vst [vmem:[%s136 + $0x5f0] sm:$0xff] %v841
        %1098 = vst [vmem:[%s136 + $0x5f8] sm:$0xff] %v842
        %1099 = vst [vmem:[%s136 + $0x600] sm:$0xff] %v843
        %1100 = vst [vmem:[%s136 + $0x608] sm:$0xff] %v844
        %1101 = vst [vmem:[%s136 + $0x610] sm:$0xff] %v845
        %1102 = vst [vmem:[%s136 + $0x618] sm:$0xff] %v846
        %1103 = vst [vmem:[%s136 + $0x620] sm:$0xff] %v847
        %1104 = vst [vmem:[%s136 + $0x628] sm:$0xff] %v848
        %1105 = vst [vmem:[%s136 + $0x630] sm:$0xff] %v849
        %1106 = vst [vmem:[%s136 + $0x638] sm:$0xff] %v850
        %1107 = vst [vmem:[%s136 + $0x640] sm:$0xff] %v851
        %1108 = vst [vmem:[%s136 + $0x648] sm:$0xff] %v852
        %1109 = vst [vmem:[%s136 + $0x650] sm:$0xff] %v853
        %1110 = vst [vmem:[%s136 + $0x658] sm:$0xff] %v854
        %1111 = vst [vmem:[%s136 + $0x660] sm:$0xff] %v855
        %1112 = vst [vmem:[%s136 + $0x668] sm:$0xff] %v856
        %1113 = vst [vmem:[%s136 + $0x670] sm:$0xff] %v857
        %1114 = vst [vmem:[%s136 + $0x678] sm:$0xff] %v858
        %1115 = vst [vmem:[%s136 + $0x680] sm:$0xff] %v859
        %1116 = vst [vmem:[%s136 + $0x688] sm:$0xff] %v860
        %1117 = vst [vmem:[%s136 + $0x690] sm:$0xff] %v861
        %1118 = vst [vmem:[%s136 + $0x698] sm:$0xff] %v862
        %1119 = vst [vmem:[%s136 + $0x6a0] sm:$0xff] %v863
        %1120 = vst [vmem:[%s136 + $0x6a8] sm:$0xff] %v864
        %1121 = vst [vmem:[%s136 + $0x6b0] sm:$0xff] %v865
        %1122 = vst [vmem:[%s136 + $0x6b8] sm:$0xff] %v866
        %1123 = vst [vmem:[%s136 + $0x6c0] sm:$0xff] %v867
        %1124 = vst [vmem:[%s136 + $0x6c8] sm:$0xff] %v868
        %1125 = vst [vmem:[%s136 + $0x6d0] sm:$0xff] %v869
        %1126 = vst [vmem:[%s136 + $0x6d8] sm:$0xff] %v870
        %1127 = vst [vmem:[%s136 + $0x6e0] sm:$0xff] %v871
        %1128 = vst [vmem:[%s136 + $0x6e8] sm:$0xff] %v872
        %1129 = vst [vmem:[%s136 + $0x6f0] sm:$0xff] %v873
        %1130 = vst [vmem:[%s136 + $0x6f8] sm:$0xff] %v874
        %1131 = vst [vmem:[%s136 + $0x700] sm:$0xff] %v875
        %1132 = vst [vmem:[%s136 + $0x708] sm:$0xff] %v876
        %1133 = vst [vmem:[%s136 + $0x710] sm:$0xff] %v877
        %1134 = vst [vmem:[%s136 + $0x718] sm:$0xff] %v878
        %1135 = vst [vmem:[%s136 + $0x720] sm:$0xff] %v879
        %1136 = vst [vmem:[%s136 + $0x728] sm:$0xff] %v880
        %1137 = vst [vmem:[%s136 + $0x730] sm:$0xff] %v881
        %1138 = vst [vmem:[%s136 + $0x738] sm:$0xff] %v882
        %1139 = vst [vmem:[%s136 + $0x740] sm:$0xff] %v883
        %1140 = vst [vmem:[%s136 + $0x748] sm:$0xff] %v884
        %1141 = vst [vmem:[%s136 + $0x750] sm:$0xff] %v885
        %1142 = vst [vmem:[%s136 + $0x758] sm:$0xff] %v886
        %1143 = vst [vmem:[%s136 + $0x760] sm:$0xff] %v887
        %1144 = vst [vmem:[%s136 + $0x768] sm:$0xff] %v888
        %1145 = vst [vmem:[%s136 + $0x770] sm:$0xff] %v889
        %1146 = vst [vmem:[%s136 + $0x778] sm:$0xff] %v890
        %1147 = vst [vmem:[%s136 + $0x780] sm:$0xff] %v891
        %1148 = vst [vmem:[%s136 + $0x788] sm:$0xff] %v892
        %1149 = vst [vmem:[%s136 + $0x790] sm:$0xff] %v893
        %1150 = vst [vmem:[%s136 + $0x798] sm:$0xff] %v894
        %1151 = vst [vmem:[%s136 + $0x7a0] sm:$0xff] %v895
        %1152 = vst [vmem:[%s136 + $0x7a8] sm:$0xff] %v896
        %1153 = vst [vmem:[%s136 + $0x7b0] sm:$0xff] %v897
        %1154 = vst [vmem:[%s136 + $0x7b8] sm:$0xff] %v898
        %1155 = vst [vmem:[%s136 + $0x7c0] sm:$0xff] %v899
        %1156 = vst [vmem:[%s136 + $0x7c8] sm:$0xff] %v900
        %1157 = vst [vmem:[%s136 + $0x7d0] sm:$0xff] %v901
        %1158 = vst [vmem:[%s136 + $0x7d8] sm:$0xff] %v902
        %1159 = vst [vmem:[%s136 + $0x7e0] sm:$0xff] %v903
        %1160 = vst [vmem:[%s136 + $0x7e8] sm:$0xff] %v904
        %1161 = vst [vmem:[%s136 + $0x7f0] sm:$0xff] %v905
        %1162 = vst [vmem:[%s136 + $0x7f8] sm:$0xff] %v906
        %s1163 = sand.u32 %s52, 1
        %s1164 = scalar_lea.sflag [#allocation4], %s1163
        %s1165 = sand.u32 %s52, 1
        %s1166 = smul.addr %s1165, 2048
        %s1167 = scalar_lea.vmem [#allocation5], %s1166
        // Predicated region
        $region29: #{tpu_custom_call.1} parent=23 // pred_check
          %p1168 = pneg %p62
        $region30: #{tpu_custom_call.1} parent=23 // pred_check_branch
          %1170 = sbr.rel (%p1168) target = $region32
        $region31: #{tpu_custom_call.1} parent=23 // pred_region
          %s1171 = smul.u32 256, %s18
          %1173 = vsyncadd %s1164, 0
          %s1174 = smul.addr %s1171, 8
          %s1175 = scalar_lea.hbm %s1, %s1174
          %s1176 = sshll.u32 %s1167, 4
          %s1177 = int_to_ptr.vmem [resolvable:$true] %s1176
          %s1178 = sshll.u32 %s1175, 4
          %s1179 = int_to_ptr.hbm [resolvable:$true] %s1178
          %1184 = dma.vmem_to_hbm [thread:$0]  %s1177, 32768, %s1179, %s1164, 128, 128, 8
        $region32: #{tpu_custom_call.1} parent=23 // pred_fallthru
          _
      $region24: #{tpu_custom_call.1} parent=5 // pred_fallthru
        _
      %p1185 = scmp.le.s32.totalorder 2, %s13
      // Predicated region
      $region33: #{tpu_custom_call.1} parent=5 // pred_check
        %p1186 = pneg %p1185
      $region34: #{tpu_custom_call.1} parent=5 // pred_check_branch
        %1188 = sbr.rel (%p1186) target = $region36
      $region35: #{tpu_custom_call.1} parent=5 // pred_region
        %s1189 = ssub.s32 %s13, 2
        // Predicated region
        $region37: #{tpu_custom_call.1} parent=35 // pred_check
          %p1190 = pneg %p68
        $region38: #{tpu_custom_call.1} parent=35 // pred_check_branch
          %1192 = sbr.rel (%p1190) target = $region40
        $region39: #{tpu_custom_call.1} parent=35 // pred_region
          %s1193 = sand.u32 %s53, 1
          %s1194 = scalar_lea.sflag [#allocation4], %s1193
          %s1195 = sand.u32 %s53, 1
          %s1196 = smul.addr %s1195, 2048
          %s1197 = scalar_lea.vmem [#allocation5], %s1196
          %1199 = dma.done %s1194, 32768
        $region40: #{tpu_custom_call.1} parent=35 // pred_fallthru
          _
      $region36: #{tpu_custom_call.1} parent=5 // pred_fallthru
        _
    $region6: #{tpu_custom_call.1} parent=1 // loop_footer
      %s17 = sadd.s32 1, %s13
    $region7: #{tpu_custom_call.1} parent=1 // loop_footer_branch
      %12 = sbr.rel target = $region3
    $region8: #{tpu_custom_call.1} parent=1 // loop_exit
      _
    %1200 = vsyncpa [#allocation3], 1
    %s1201 = scalar_lea.sflag [#allocation3], 1
    %1202 = vsyncpa %s1201, 1
    %1203 = vsyncpa [#allocation4], 1
    %s1204 = scalar_lea.sflag [#allocation4], 1
    %1205 = vsyncpa %s1204, 1

</llo_original>
